<compile_context>
chip_gen: v7x
topology: tpu7x:2x2x1
jax: 0.10.0
libtpu: 0.0.40
codegen_flags: <defaults>
</compile_context>

<pallas_src>
import jax
import jax.numpy as jnp
from jax.experimental import pallas as pl
from jax.experimental.pallas import tpu as pltpu

D_HID = 32
MAX_LEN = 100
SEQ = 8
BATCH = 2

LANE = 128
# Per-buffer tile budget. ~2 MiB tiles keep 2*(x tile) + 2*(out tile) + P tile
# well under every generation's default scoped-VMEM limit while amortizing the
# ~0.35 us per-grid-step overhead against HBM bandwidth.
TILE_BYTES = 2 * 1024 * 1024


def make_pe_table(d_hid: int, max_len: int = MAX_LEN) -> jnp.ndarray:
    """Sinusoidal table, identical math to the PyTorch __init__; shape (max_len, d_hid)."""
    pos = jnp.arange(max_len, dtype=jnp.float32).reshape(-1, 1)
    inv = jnp.power(10000.0, jnp.arange(0, d_hid, 2, dtype=jnp.float32) / d_hid)
    ang = pos / inv                               # (max_len, d_hid // 2)
    p = jnp.zeros((max_len, d_hid), jnp.float32)
    p = p.at[:, 0::2].set(jnp.sin(ang))
    p = p.at[:, 1::2].set(jnp.cos(ang))
    return p


# --------------------------------- kernel -------------------------------------
def pe_kernel(x_ref, p_ref, o_ref):
    # All refs share the same (block_rows, 128) block shape -> pure VPU add.
    o_ref[...] = x_ref[...] + p_ref[...]


def _choose_batch_tile(batch: int, rows_per_batch: int, itemsize: int) -> int:
    """Pick a batch-tile size (whole batches per block) under TILE_BYTES.

    Keeps block rows a multiple of 8 sublanes whenever the block is not the
    full array, so the BlockSpec satisfies the (8, 128) tiling constraint.
    """
    row_bytes = rows_per_batch * LANE * itemsize
    if batch * row_bytes <= TILE_BYTES:
        return batch                          # single block == full array
    max_tb = max(1, TILE_BYTES // row_bytes)
    best = 1
    for tb in range(1, min(batch, max_tb) + 1):
        if batch % tb == 0 and (tb * rows_per_batch) % 8 == 0:
            best = tb
    if best == 1:                             # fall back to any divisor
        for tb in range(1, min(batch, max_tb) + 1):
            if batch % tb == 0:
                best = tb
    return best


def positional_encoding(x: jnp.ndarray, p_table: jnp.ndarray) -> jnp.ndarray:
    """x: (B, S, D);  p_table: (max_len, D).  Returns x + P[:, :S, :]."""
    B, S, D = x.shape
    assert S <= p_table.shape[0], (
        f"sequence length {S} exceeds positional-encoding max_len {p_table.shape[0]}")

    n = S * D
    if n % LANE != 0:
        # TODO(synk): lane-dense slab layout needs S*D % 128 == 0; for odd
        # shapes fall back to the plain XLA add (same semantics).
        return x + p_table[None, :S, :].astype(x.dtype)

    rows_per_batch = n // LANE                 # 128-lane rows per batch element
    itemsize = jnp.dtype(x.dtype).itemsize
    tb = _choose_batch_tile(B, rows_per_batch, itemsize)
    block_rows = tb * rows_per_batch
    total_rows = B * rows_per_batch
    grid = (total_rows // block_rows,)

    # Row-major, layout-preserving reshapes (free): last dim is exactly 128.
    x_flat = x.reshape(total_rows, LANE)
    # Pre-tile the PE row to the x block shape (tb whole batches per block) so
    # the kernel add needs no broadcast; P stays resident in VMEM (index_map
    # below always returns block (0, 0), so it is DMA'd exactly once).
    p_row = p_table[:S].astype(x.dtype).reshape(1, n)
    p_tiled = jnp.tile(p_row, (tb, 1)).reshape(block_rows, LANE)

    cost = pl.CostEstimate(
        flops=B * S * D,
        transcendentals=0,
        bytes_accessed=(2 * total_rows + block_rows) * LANE * itemsize,
    )

    out_flat = pl.pallas_call(
        pe_kernel,
        out_shape=jax.ShapeDtypeStruct((total_rows, LANE), x.dtype),
        grid=grid,
        in_specs=[
            pl.BlockSpec((block_rows, LANE), lambda i: (i, 0)),   # x: streams
            pl.BlockSpec((block_rows, LANE), lambda i: (0, 0)),   # P: resident
        ],
        out_specs=pl.BlockSpec((block_rows, LANE), lambda i: (i, 0)),
        input_output_aliases={0: 0},          # write the add in place over x
        compiler_params=pltpu.CompilerParams(
            dimension_semantics=("parallel",)),
        cost_estimate=cost,
    )(x_flat, p_tiled)

    return out_flat.reshape(B, S, D)


# --------------------------------- driver -------------------------------------
if __name__ == "__main__":
    key = jax.random.PRNGKey(0)
    x = jax.random.normal(key, (BATCH, SEQ, D_HID), jnp.float32)
    p_table = make_pe_table(D_HID, MAX_LEN)

    out = jax.block_until_ready(positional_encoding(x, p_table))

    # pure-JAX reference: X + P[:, :S, :]
    ref = jax.block_until_ready(x + p_table[None, :SEQ, :])

    assert out.shape == (BATCH, SEQ, D_HID)
    assert jnp.allclose(out, ref, rtol=1e-6, atol=1e-6), "mismatch vs reference"
    print("KERNEL_OK")
</pallas_src>

<mosaic_0001>
module attributes {stable_mosaic.version = 11 : i64} {
  func.func @pe_kernel(%arg0: i32, %arg1: memref<4x128xf32, #tpu.memory_space<vmem>>, %arg2: memref<4x128xf32, #tpu.memory_space<vmem>>, %arg3: memref<4x128xf32, #tpu.memory_space<vmem>>) attributes {dimension_semantics = [#tpu.dimension_semantics<parallel>], iteration_bounds = array<i64: 1>, scalar_prefetch = 0 : i64, scratch_operands = 0 : i64, tpu.core_type = #tpu.core_type<tc>, window_params = [{transform_indices = @transform_0, window_bounds = array<i64: 4, 128>}, {pipeline_mode = #tpu.pipeline_mode<synchronous>, transform_indices = @transform_1, window_bounds = array<i64: 4, 128>}, {transform_indices = @transform_2, window_bounds = array<i64: 4, 128>}]} {
    %c0 = arith.constant 0 : index
    %c0_0 = arith.constant 0 : index
    %0 = vector.load %arg1[%c0, %c0_0] : memref<4x128xf32, #tpu.memory_space<vmem>>, vector<4x128xf32>
    %c0_1 = arith.constant 0 : index
    %c0_2 = arith.constant 0 : index
    %1 = vector.load %arg2[%c0_1, %c0_2] : memref<4x128xf32, #tpu.memory_space<vmem>>, vector<4x128xf32>
    %2 = arith.addf %0, %1 : vector<4x128xf32>
    %c0_3 = arith.constant 0 : index
    %c0_4 = arith.constant 0 : index
    %3 = vector.load %arg3[%c0_3, %c0_4] : memref<4x128xf32, #tpu.memory_space<vmem>>, vector<4x128xf32>
    tpu.vector_store %arg3[%c0_3, %c0_4], %2 {strides = array<i32>} : memref<4x128xf32, #tpu.memory_space<vmem>>, vector<4x128xf32>,
    return
  }
  func.func @transform_0(%arg0: i32) -> (i32, i32) {
    %c0_i32 = arith.constant 0 : i32
    %c0_i32_0 = arith.constant 0 : i32
    return %arg0, %c0_i32 : i32, i32
  }
  func.func @transform_1(%arg0: i32) -> (i32, i32) {
    %c0_i32 = arith.constant 0 : i32
    %c0_i32_0 = arith.constant 0 : i32
    %c0_i32_1 = arith.constant 0 : i32
    return %c0_i32, %c0_i32_0 : i32, i32
  }
  func.func @transform_2(%arg0: i32) -> (i32, i32) {
    %c0_i32 = arith.constant 0 : i32
    %c0_i32_0 = arith.constant 0 : i32
    return %arg0, %c0_i32 : i32, i32
  }
}

</mosaic_0001>

<llo_original>
// kernel: tpu_custom_call.1
$region0: #{tpu_custom_call.1}
  #allocation0 [shape = 'u32[]', space=smem, size = 0x4, offset = 0x4, fixed_abs, tag = 'smem constant byte address 0x4 - core index']
  #allocation1 [shape = 'u32[144,128]{1,0:T(1,128)}', space=vmem, size = 0x12000, scoped, tag = 'internal scratch']
  %s0 = inlined_call_operand.hbm [shape: f32[4,128], index: 0, kind: input, shape index: {}, may-alias: {0,2}]
  %s1 = inlined_call_operand.vmem [shape: f32[4,128], index: 1, kind: input, shape index: {}]
  %s2 = inlined_call_operand.hbm [shape: f32[4,128], index: 2, kind: output, shape index: {}, may-alias: {0,2}]
  %s3 = sld [smem:[#allocation0]]
  $region22: #{tpu_custom_call.1} parent=0
    _
  %s5 = ssub.s32 1, %s3
  %s6 = scalar_select 0, %s5, %s3
  $region1: #{tpu_custom_call.1} parent=0
    #allocation2 [shape = 'u8[2048]{0}', space=vmem, size = 0x800, scoped, tag = 'input window, operand 0, single buffered']
    #allocation3 [shape = 's32[1]{0}', space=sflag, size = 0x4, scoped, tag = 'scoped memory for tpu_custom_call.1']
    #allocation4 [shape = 's32[1]{0}', space=sflag, size = 0x4, scoped, tag = 'scoped memory for tpu_custom_call.1']
    #allocation5 [shape = 'u8[2048]{0}', space=vmem, size = 0x800, scoped, tag = 'output window, operand 0, single buffered']
    %7 = vsyncpa [#allocation3], 0
    %8 = vsyncpa [#allocation4], 0
    // Predicated region
    $region2: #{tpu_custom_call.1} parent=1 // pred_check
      _
    $region3: #{tpu_custom_call.1} parent=1 // pred_check_branch
      %10 = sbr.rel (0) target = $region5
    $region4: #{tpu_custom_call.1} parent=1 // pred_region
      %s12 = ssub.s32 64, 64
      %13 = vsyncadd [#allocation3], %s12
      %s15 = sshll.u32 [#allocation2], 4
      %s16 = int_to_ptr.vmem [resolvable:$true] %s15
      %18 = dma.hbm_to_vmem [thread:$0]  %s0, 64, %s16, [#allocation3]
    $region5: #{tpu_custom_call.1} parent=1 // pred_fallthru
      _
    // Predicated region
    $region6: #{tpu_custom_call.1} parent=1 // pred_check
      _
    $region7: #{tpu_custom_call.1} parent=1 // pred_check_branch
      %20 = sbr.rel (0) target = $region9
    $region8: #{tpu_custom_call.1} parent=1 // pred_region
      _
    $region9: #{tpu_custom_call.1} parent=1 // pred_fallthru
      _
    // Predicated region
    $region10: #{tpu_custom_call.1} parent=1 // pred_check
      _
    $region11: #{tpu_custom_call.1} parent=1 // pred_check_branch
      %22 = sbr.rel (0) target = $region13
    $region12: #{tpu_custom_call.1} parent=1 // pred_region
      %23 = dma.done [#allocation3], 64
    $region13: #{tpu_custom_call.1} parent=1 // pred_fallthru
      _
    %v24 = vld [vmem:[#allocation2] sm:$0xf]
    %v25 = vld [vmem:[%s1] sm:$0xf]
    %v26 = vadd.f32 %v24, %v25
    %27 = vst [vmem:[#allocation5] sm:$0xf] %v26
    // Predicated region
    $region14: #{tpu_custom_call.1} parent=1 // pred_check
      _
    $region15: #{tpu_custom_call.1} parent=1 // pred_check_branch
      %29 = sbr.rel (0) target = $region17
    $region16: #{tpu_custom_call.1} parent=1 // pred_region
      %s31 = ssub.s32 64, 64
      %32 = vsyncadd [#allocation4], %s31
      %s34 = sshll.u32 [#allocation5], 4
      %s35 = int_to_ptr.vmem [resolvable:$true] %s34
      %37 = dma.vmem_to_hbm [thread:$0]  %s35, 64, %s2, [#allocation4]
    $region17: #{tpu_custom_call.1} parent=1 // pred_fallthru
      _
    // Predicated region
    $region18: #{tpu_custom_call.1} parent=1 // pred_check
      _
    $region19: #{tpu_custom_call.1} parent=1 // pred_check_branch
      %39 = sbr.rel (0) target = $region21
    $region20: #{tpu_custom_call.1} parent=1 // pred_region
      %40 = dma.done [#allocation4], 64
    $region21: #{tpu_custom_call.1} parent=1 // pred_fallthru
      _
    %41 = vsyncpa [#allocation3], 1
    %42 = vsyncpa [#allocation4], 1

</llo_original>
